<compile_context>
chip_gen: v6e
topology: v6e:2x2x1
jax: 0.10.0
libtpu: 0.0.40
codegen_flags: <defaults>
</compile_context>

<pallas_src>
import functools

import jax
import jax.numpy as jnp
from jax.experimental import pallas as pl
from jax.experimental.pallas import tpu as pltpu


# ----------------------------------------------------------------------------
# Fused kernel: one grid step == one (group of) image(s) of the batch.
# ----------------------------------------------------------------------------
def _fused_bottleneck_kernel(x_ref, s1_ref, b1_ref, w1_ref, b2_ref, w2_ref,
                             mask_ref, o_ref, patch_ref, *, width):
    """Shapes seen by the kernel (channel-major, lane axis L = images*H*W):

      x_ref     : (1, Cin, L)        f32   input image(s)
      s1/b1     : (Cin, 1)           f32   folded BN1 scale / shift
      w1_ref    : (Cinter, Cin)      bf16  1x1 conv weight (BN2 scale folded in)
      b2_ref    : (Cinter, 1)        f32   folded BN2 shift
      w2_ref    : (Cout, 9*Cinter)   bf16  3x3 conv weight, im2col layout
      mask_ref  : (9, L)             f32   0/1 border-validity mask per tap
      o_ref     : (1, Cin+Cout, L)   f32   [x ; conv3x3 output] channel concat
      patch_ref : (9*Cinter, L)      bf16  VMEM scratch for the im2col patches
    """
    cin = x_ref.shape[1]
    cinter = w1_ref.shape[0]
    lanes = x_ref.shape[2]

    x = x_ref[0]                                               # (Cin, L) f32

    # --- BN1 + ReLU (f32 on the VPU), bf16 operand for the MXU --------------
    h1 = jnp.maximum(x * s1_ref[...] + b1_ref[...], 0.0)
    # 1x1 conv == channel matmul: (Cinter, Cin) @ (Cin, L) -> (Cinter, L).
    # BN2's scale is pre-folded into w1; only shift + ReLU remain on the VPU.
    z = jnp.dot(w1_ref[...], h1.astype(jnp.bfloat16),
                preferred_element_type=jnp.float32)
    a = jnp.maximum(z + b2_ref[...], 0.0)                      # (Cinter, L) f32

    # --- 3x3 conv (pad=1): write each masked/rolled tap straight into the
    #     bf16 VMEM im2col scratch (one tap live at a time, no f32 concat). ---
    for dy in range(3):
        for dx in range(3):
            t = dy * 3 + dx
            off = (dy - 1) * width + (dx - 1)
            if off == 0:
                tap = a                                        # center tap
            else:
                # XLU lane rotate (separate VLIW slot from the VPU) + 0/1
                # border mask == zero padding without spatial slicing.
                shifted = pltpu.roll(a, shift=(-off) % lanes, axis=1)
                tap = shifted * mask_ref[t][None, :]
            patch_ref[t * cinter:(t + 1) * cinter, :] = tap.astype(jnp.bfloat16)

    # ONE MXU contraction over K = 9*Cinter, f32 accumulation.
    y = jnp.dot(w2_ref[...], patch_ref[...],
                preferred_element_type=jnp.float32)            # (Cout, L)

    # --- DenseNet channel concat as two lane-dense stores --------------------
    o_ref[0, :cin, :] = x
    o_ref[0, cin:, :] = y


# ----------------------------------------------------------------------------
# Parameter construction (deterministic, torch-shaped) and helpers.
# ----------------------------------------------------------------------------
def make_params(key, in_planes, out_planes):
    inter = out_planes * 4
    ks = jax.random.split(key, 8)
    return {
        # BN1 over in_planes
        'g1': jax.random.uniform(ks[0], (in_planes,), jnp.float32, 0.5, 1.5),
        'b1': jax.random.normal(ks[1], (in_planes,), jnp.float32) * 0.1,
        'm1': jax.random.normal(ks[2], (in_planes,), jnp.float32) * 0.1,
        'v1': jax.random.uniform(ks[3], (in_planes,), jnp.float32, 0.5, 1.5),
        # conv1 weight, torch layout (inter, in, 1, 1)
        'w1': jax.random.normal(ks[4], (inter, in_planes, 1, 1),
                                jnp.float32) * 0.2,
        # BN2 over inter
        'g2': jax.random.uniform(ks[5], (inter,), jnp.float32, 0.5, 1.5),
        'b2': jax.random.normal(ks[6], (inter,), jnp.float32) * 0.1,
        'm2': jnp.zeros((inter,), jnp.float32),
        'v2': jnp.ones((inter,), jnp.float32),
        # conv2 weight, torch layout (out, inter, 3, 3)
        'w2': jax.random.normal(ks[7], (out_planes, inter, 3, 3),
                                jnp.float32) * 0.1,
    }


def _bn_affine(gamma, beta, mean, var, eps=1e-5):
    scale = gamma / jnp.sqrt(var + eps)
    shift = beta - mean * scale
    return scale, shift


def _border_masks(h, w):
    """0/1 validity mask per 3x3 tap in the flat (H*W,) pixel order."""
    ii = jnp.arange(h)[:, None]
    jj = jnp.arange(w)[None, :]
    rows = []
    for dy in range(3):
        for dx in range(3):
            valid = ((ii + dy - 1 >= 0) & (ii + dy - 1 < h) &
                     (jj + dx - 1 >= 0) & (jj + dx - 1 < w))
            rows.append(valid.reshape(h * w))
    return jnp.stack(rows, axis=0).astype(jnp.float32)          # (9, H*W)


def _pick_group(n, hw, *, target_lanes=1024, min_grid_steps=2):
    """Images folded into one grid step so the lane axis is >= target_lanes,
    while keeping at least `min_grid_steps` grid steps (megacore sharding)."""
    best = 1
    for g in range(1, n + 1):
        if n % g != 0:
            continue
        if g > 1 and n // g < min_grid_steps:
            break
        best = g
        if g * hw >= target_lanes:
            break
    return best


def _vmem_capacity_bytes():
    try:
        return int(pltpu.get_tpu_info().vmem_capacity_bytes)
    except Exception:
        return 64 * 1024 * 1024  # conservative (v7x per-TC)


# ----------------------------------------------------------------------------
# Forward pass (wrapper does only free reshapes for the tested g=1 path).
# ----------------------------------------------------------------------------
@jax.jit
def bottleneck_block_forward(x_nchw, params):
    """x_nchw: (N, C_in, H, W) f32  ->  (N, C_in + out_planes, H, W) f32."""
    n, cin, h, w = x_nchw.shape
    hw = h * w
    cinter = params['w1'].shape[0]
    cout = params['w2'].shape[0]

    s1, t1 = _bn_affine(params['g1'], params['b1'], params['m1'], params['v1'])
    s2, t2 = _bn_affine(params['g2'], params['b2'], params['m2'], params['v2'])

    # conv1 weight (Cinter, Cin, 1, 1) -> (Cinter, Cin) with BN2's scale folded
    # in (in f32, before the bf16 cast); the kernel only adds t2 + ReLU.
    w1 = (s2[:, None] * params['w1'][:, :, 0, 0]).astype(jnp.bfloat16)
    # conv2 weight (Cout, Cinter, 3, 3) -> im2col layout (Cout, 9*Cinter);
    # row order (dy, dx, c) matches the kernel's per-tap scratch writes.
    w2 = jnp.transpose(params['w2'], (0, 2, 3, 1)).reshape(
        cout, 9 * cinter).astype(jnp.bfloat16)

    # Fold g images per grid step when H*W is small (lane-width amortization).
    g = _pick_group(n, hw)
    lanes = g * hw
    steps = n // g

    mask = _border_masks(h, w)                                   # (9, HW)
    if g > 1:
        mask = jnp.tile(mask, (1, g))                            # (9, g*HW)
        # (N, C, H*W) -> (N/g, C, g*H*W) with images contiguous on lanes.
        x3 = x_nchw.reshape(steps, g, cin, hw).transpose(0, 2, 1, 3)
        x3 = x3.reshape(steps, cin, lanes)
    else:
        # NCHW -> channel-major flat (N, C, H*W): a free reshape.
        x3 = x_nchw.reshape(n, cin, hw)

    # FLOP / byte hints for XLA scheduling of surrounding ops.
    flops = 2 * n * hw * (cinter * cin + cout * 9 * cinter)
    bytes_accessed = (n * cin * hw * 4 + n * (cin + cout) * hw * 4
                      + cinter * cin * 2 + cout * 9 * cinter * 2
                      + 9 * lanes * 4 + (2 * cin + cinter) * 4)

    # VMEM budget: double-buffered x/out blocks + pinned constants + scratch
    # + f32 intermediates, with 2x headroom, capped against device capacity.
    vmem_est = (2 * cin * lanes * 4                 # x block
                + 2 * (cin + cout) * lanes * 4      # output block
                + 2 * (2 * cin + cinter) * 4        # BN scale/shift blocks
                + 2 * cinter * cin * 2              # w1 (bf16)
                + 2 * cout * 9 * cinter * 2         # w2 (bf16)
                + 2 * 9 * lanes * 4                 # border masks
                + 9 * cinter * lanes * 2            # bf16 im2col scratch
                + 4 * cinter * lanes * 4)           # f32 intermediates (z, a, ...)
    vmem_limit = int(min(int(0.8 * _vmem_capacity_bytes()),
                         max(16 * 1024 * 1024, 2 * vmem_est)))

    kernel = functools.partial(_fused_bottleneck_kernel, width=w)
    out3 = pl.pallas_call(
        kernel,
        out_shape=jax.ShapeDtypeStruct((steps, cin + cout, lanes), jnp.float32),
        grid=(steps,),
        in_specs=[
            pl.BlockSpec((1, cin, lanes), lambda i: (i, 0, 0)),    # x (per step)
            pl.BlockSpec((cin, 1), lambda i: (0, 0)),              # BN1 scale
            pl.BlockSpec((cin, 1), lambda i: (0, 0)),              # BN1 shift
            pl.BlockSpec((cinter, cin), lambda i: (0, 0)),         # w1 (scale-folded)
            pl.BlockSpec((cinter, 1), lambda i: (0, 0)),           # BN2 shift
            pl.BlockSpec((cout, 9 * cinter), lambda i: (0, 0)),    # w2 (im2col)
            pl.BlockSpec((9, lanes), lambda i: (0, 0)),            # border masks
        ],
        out_specs=pl.BlockSpec((1, cin + cout, lanes), lambda i: (i, 0, 0)),
        scratch_shapes=[pltpu.VMEM((9 * cinter, lanes), jnp.bfloat16)],
        compiler_params=pltpu.CompilerParams(
            dimension_semantics=("parallel",),        # megacore sharding
            vmem_limit_bytes=vmem_limit),
        cost_estimate=pl.CostEstimate(flops=flops, transcendentals=0,
                                      bytes_accessed=bytes_accessed),
    )(x3, s1.reshape(cin, 1), t1.reshape(cin, 1), w1,
      t2.reshape(cinter, 1), w2, mask)

    if g > 1:
        out = out3.reshape(steps, cin + cout, g, hw).transpose(0, 2, 1, 3)
        return out.reshape(n, cin + cout, h, w)
    return out3.reshape(n, cin + cout, h, w)


# ----------------------------------------------------------------------------
# Pure-JAX f32 reference (lax.conv) used only for the correctness check.
# ----------------------------------------------------------------------------
def reference_forward(x_nchw, params):
    s1, t1 = _bn_affine(params['g1'], params['b1'], params['m1'], params['v1'])
    s2, t2 = _bn_affine(params['g2'], params['b2'], params['m2'], params['v2'])
    h = jnp.maximum(x_nchw * s1[None, :, None, None] + t1[None, :, None, None], 0.0)
    z = jax.lax.conv_general_dilated(
        h, params['w1'], (1, 1), 'VALID',
        dimension_numbers=('NCHW', 'OIHW', 'NCHW'))
    a = jnp.maximum(z * s2[None, :, None, None] + t2[None, :, None, None], 0.0)
    y = jax.lax.conv_general_dilated(
        a, params['w2'], (1, 1), ((1, 1), (1, 1)),
        dimension_numbers=('NCHW', 'OIHW', 'NCHW'))
    return jnp.concatenate([x_nchw, y], axis=1)


if __name__ == "__main__":
    key = jax.random.PRNGKey(0)
    kx, kp = jax.random.split(key)

    N, C_IN, H, W = 2, 4, 16, 16
    OUT_PLANES = 4

    x = jax.random.normal(kx, (N, C_IN, H, W), jnp.float32)
    params = make_params(kp, C_IN, OUT_PLANES)

    out = jax.block_until_ready(bottleneck_block_forward(x, params))
    assert out.shape == (N, C_IN + OUT_PLANES, H, W), out.shape

    ref = jax.block_until_ready(reference_forward(x, params))
    # Kernel uses bf16 MXU operands (f32 accumulation), reference is pure f32,
    # so compare with a bf16-appropriate tolerance.
    max_err = float(jnp.max(jnp.abs(out - ref)))
    assert jnp.allclose(out, ref, rtol=5e-2, atol=1e-1), max_err
    # The DenseNet passthrough half of the concat must be bit-exact.
    assert bool(jnp.array_equal(out[:, :C_IN], x))

    print("KERNEL_OK")
</pallas_src>

<mosaic_0001>
module attributes {stable_mosaic.version = 11 : i64} {
  func.func @_fused_bottleneck_kernel(%arg0: i32, %arg1: memref<1x4x256xf32, #tpu.memory_space<vmem>>, %arg2: memref<4x1xf32, #tpu.memory_space<vmem>>, %arg3: memref<4x1xf32, #tpu.memory_space<vmem>>, %arg4: memref<16x4xbf16, #tpu.memory_space<vmem>>, %arg5: memref<16x1xf32, #tpu.memory_space<vmem>>, %arg6: memref<4x144xbf16, #tpu.memory_space<vmem>>, %arg7: memref<9x256xf32, #tpu.memory_space<vmem>>, %arg8: memref<1x8x256xf32, #tpu.memory_space<vmem>>, %arg9: memref<144x256xbf16, #tpu.memory_space<vmem>>) attributes {dimension_semantics = [#tpu.dimension_semantics<parallel>], iteration_bounds = array<i64: 2>, scalar_prefetch = 0 : i64, scratch_operands = 1 : i64, tpu.core_type = #tpu.core_type<tc>, window_params = [{transform_indices = @transform_0, window_bounds = array<i64: 1, 4, 256>}, {pipeline_mode = #tpu.pipeline_mode<synchronous>, transform_indices = @transform_1, window_bounds = array<i64: 4, 1>}, {pipeline_mode = #tpu.pipeline_mode<synchronous>, transform_indices = @transform_2, window_bounds = array<i64: 4, 1>}, {pipeline_mode = #tpu.pipeline_mode<synchronous>, transform_indices = @transform_3, window_bounds = array<i64: 16, 4>}, {pipeline_mode = #tpu.pipeline_mode<synchronous>, transform_indices = @transform_4, window_bounds = array<i64: 16, 1>}, {pipeline_mode = #tpu.pipeline_mode<synchronous>, transform_indices = @transform_5, window_bounds = array<i64: 4, 144>}, {pipeline_mode = #tpu.pipeline_mode<synchronous>, transform_indices = @transform_6, window_bounds = array<i64: 9, 256>}, {transform_indices = @transform_7, window_bounds = array<i64: 1, 8, 256>}]} {
    %c0 = arith.constant 0 : index
    %c0_0 = arith.constant 0 : index
    %c0_1 = arith.constant 0 : index
    %0 = vector.load %arg1[%c0, %c0_0, %c0_1] : memref<1x4x256xf32, #tpu.memory_space<vmem>>, vector<1x4x256xf32>
    %1 = vector.shape_cast %0 : vector<1x4x256xf32> to vector<4x256xf32>
    %c0_2 = arith.constant 0 : index
    %c0_3 = arith.constant 0 : index
    %2 = vector.load %arg2[%c0_2, %c0_3] : memref<4x1xf32, #tpu.memory_space<vmem>>, vector<4x1xf32>
    %3 = vector.broadcast %2 : vector<4x1xf32> to vector<4x256xf32>
    %4 = arith.mulf %1, %3 : vector<4x256xf32>
    %c0_4 = arith.constant 0 : index
    %c0_5 = arith.constant 0 : index
    %5 = vector.load %arg3[%c0_4, %c0_5] : memref<4x1xf32, #tpu.memory_space<vmem>>, vector<4x1xf32>
    %6 = vector.broadcast %5 : vector<4x1xf32> to vector<4x256xf32>
    %7 = arith.addf %4, %6 : vector<4x256xf32>
    %cst = arith.constant 0.000000e+00 : f32
    %8 = vector.broadcast %cst : f32 to vector<4x256xf32>
    %9 = arith.maximumf %7, %8 : vector<4x256xf32>
    %c0_6 = arith.constant 0 : index
    %c0_7 = arith.constant 0 : index
    %10 = vector.load %arg4[%c0_6, %c0_7] : memref<16x4xbf16, #tpu.memory_space<vmem>>, vector<16x4xbf16>
    %11 = arith.truncf %9 : vector<4x256xf32> to vector<4x256xbf16>
    %cst_8 = arith.constant dense<0.000000e+00> : vector<16x256xf32>
    %12 = tpu.matmul %10, %11, %cst_8 {dimension_numbers = #tpu.dot_dimension_numbers<[1], [0], [0], [1], [0, 0, 1, 1], [], []>} : vector<16x4xbf16>, vector<4x256xbf16>, vector<16x256xf32> -> vector<16x256xf32>
    %c0_9 = arith.constant 0 : index
    %c0_10 = arith.constant 0 : index
    %13 = vector.load %arg5[%c0_9, %c0_10] : memref<16x1xf32, #tpu.memory_space<vmem>>, vector<16x1xf32>
    %14 = vector.broadcast %13 : vector<16x1xf32> to vector<16x256xf32>
    %15 = arith.addf %12, %14 : vector<16x256xf32>
    %cst_11 = arith.constant 0.000000e+00 : f32
    %16 = vector.broadcast %cst_11 : f32 to vector<16x256xf32>
    %17 = arith.maximumf %15, %16 : vector<16x256xf32>
    %c17_i32 = arith.constant 17 : i32
    %18 = tpu.dynamic_rotate %17 by %c17_i32 dim 1 : vector<16x256xf32>, i32 -> vector<16x256xf32>
    %c0_12 = arith.constant 0 : index
    %c0_13 = arith.constant 0 : index
    %19 = vector.load %arg7[%c0_12, %c0_13] : memref<9x256xf32, #tpu.memory_space<vmem>>, vector<1x256xf32>
    %20 = vector.shape_cast %19 : vector<1x256xf32> to vector<256xf32>
    %21 = vector.shape_cast %20 : vector<256xf32> to vector<1x256xf32>
    %22 = vector.broadcast %21 : vector<1x256xf32> to vector<16x256xf32>
    %23 = arith.mulf %18, %22 : vector<16x256xf32>
    %24 = arith.truncf %23 : vector<16x256xf32> to vector<16x256xbf16>
    %c0_14 = arith.constant 0 : index
    %c0_15 = arith.constant 0 : index
    %25 = vector.load %arg9[%c0_14, %c0_15] : memref<144x256xbf16, #tpu.memory_space<vmem>>, vector<16x256xbf16>
    tpu.vector_store %arg9[%c0_14, %c0_15], %24 {strides = array<i32>} : memref<144x256xbf16, #tpu.memory_space<vmem>>, vector<16x256xbf16>,
    %c16_i32 = arith.constant 16 : i32
    %26 = tpu.dynamic_rotate %17 by %c16_i32 dim 1 : vector<16x256xf32>, i32 -> vector<16x256xf32>
    %c1 = arith.constant 1 : index
    %c0_16 = arith.constant 0 : index
    %27 = vector.load %arg7[%c1, %c0_16] : memref<9x256xf32, #tpu.memory_space<vmem>>, vector<1x256xf32>
    %28 = vector.shape_cast %27 : vector<1x256xf32> to vector<256xf32>
    %29 = vector.shape_cast %28 : vector<256xf32> to vector<1x256xf32>
    %30 = vector.broadcast %29 : vector<1x256xf32> to vector<16x256xf32>
    %31 = arith.mulf %26, %30 : vector<16x256xf32>
    %32 = arith.truncf %31 : vector<16x256xf32> to vector<16x256xbf16>
    %c16 = arith.constant 16 : index
    %c0_17 = arith.constant 0 : index
    %33 = vector.load %arg9[%c16, %c0_17] : memref<144x256xbf16, #tpu.memory_space<vmem>>, vector<16x256xbf16>
    tpu.vector_store %arg9[%c16, %c0_17], %32 {strides = array<i32>} : memref<144x256xbf16, #tpu.memory_space<vmem>>, vector<16x256xbf16>,
    %c15_i32 = arith.constant 15 : i32
    %34 = tpu.dynamic_rotate %17 by %c15_i32 dim 1 : vector<16x256xf32>, i32 -> vector<16x256xf32>
    %c2 = arith.constant 2 : index
    %c0_18 = arith.constant 0 : index
    %35 = vector.load %arg7[%c2, %c0_18] : memref<9x256xf32, #tpu.memory_space<vmem>>, vector<1x256xf32>
    %36 = vector.shape_cast %35 : vector<1x256xf32> to vector<256xf32>
    %37 = vector.shape_cast %36 : vector<256xf32> to vector<1x256xf32>
    %38 = vector.broadcast %37 : vector<1x256xf32> to vector<16x256xf32>
    %39 = arith.mulf %34, %38 : vector<16x256xf32>
    %40 = arith.truncf %39 : vector<16x256xf32> to vector<16x256xbf16>
    %c32 = arith.constant 32 : index
    %c0_19 = arith.constant 0 : index
    %41 = vector.load %arg9[%c32, %c0_19] : memref<144x256xbf16, #tpu.memory_space<vmem>>, vector<16x256xbf16>
    tpu.vector_store %arg9[%c32, %c0_19], %40 {strides = array<i32>} : memref<144x256xbf16, #tpu.memory_space<vmem>>, vector<16x256xbf16>,
    %c1_i32 = arith.constant 1 : i32
    %42 = tpu.dynamic_rotate %17 by %c1_i32 dim 1 : vector<16x256xf32>, i32 -> vector<16x256xf32>
    %c3 = arith.constant 3 : index
    %c0_20 = arith.constant 0 : index
    %43 = vector.load %arg7[%c3, %c0_20] : memref<9x256xf32, #tpu.memory_space<vmem>>, vector<1x256xf32>
    %44 = vector.shape_cast %43 : vector<1x256xf32> to vector<256xf32>
    %45 = vector.shape_cast %44 : vector<256xf32> to vector<1x256xf32>
    %46 = vector.broadcast %45 : vector<1x256xf32> to vector<16x256xf32>
    %47 = arith.mulf %42, %46 : vector<16x256xf32>
    %48 = arith.truncf %47 : vector<16x256xf32> to vector<16x256xbf16>
    %c48 = arith.constant 48 : index
    %c0_21 = arith.constant 0 : index
    %49 = vector.load %arg9[%c48, %c0_21] : memref<144x256xbf16, #tpu.memory_space<vmem>>, vector<16x256xbf16>
    tpu.vector_store %arg9[%c48, %c0_21], %48 {strides = array<i32>} : memref<144x256xbf16, #tpu.memory_space<vmem>>, vector<16x256xbf16>,
    %50 = arith.truncf %17 : vector<16x256xf32> to vector<16x256xbf16>
    %c64 = arith.constant 64 : index
    %c0_22 = arith.constant 0 : index
    %51 = vector.load %arg9[%c64, %c0_22] : memref<144x256xbf16, #tpu.memory_space<vmem>>, vector<16x256xbf16>
    tpu.vector_store %arg9[%c64, %c0_22], %50 {strides = array<i32>} : memref<144x256xbf16, #tpu.memory_space<vmem>>, vector<16x256xbf16>,
    %c255_i32 = arith.constant 255 : i32
    %52 = tpu.dynamic_rotate %17 by %c255_i32 dim 1 : vector<16x256xf32>, i32 -> vector<16x256xf32>
    %c5 = arith.constant 5 : index
    %c0_23 = arith.constant 0 : index
    %53 = vector.load %arg7[%c5, %c0_23] : memref<9x256xf32, #tpu.memory_space<vmem>>, vector<1x256xf32>
    %54 = vector.shape_cast %53 : vector<1x256xf32> to vector<256xf32>
    %55 = vector.shape_cast %54 : vector<256xf32> to vector<1x256xf32>
    %56 = vector.broadcast %55 : vector<1x256xf32> to vector<16x256xf32>
    %57 = arith.mulf %52, %56 : vector<16x256xf32>
    %58 = arith.truncf %57 : vector<16x256xf32> to vector<16x256xbf16>
    %c80 = arith.constant 80 : index
    %c0_24 = arith.constant 0 : index
    %59 = vector.load %arg9[%c80, %c0_24] : memref<144x256xbf16, #tpu.memory_space<vmem>>, vector<16x256xbf16>
    tpu.vector_store %arg9[%c80, %c0_24], %58 {strides = array<i32>} : memref<144x256xbf16, #tpu.memory_space<vmem>>, vector<16x256xbf16>,
    %c241_i32 = arith.constant 241 : i32
    %60 = tpu.dynamic_rotate %17 by %c241_i32 dim 1 : vector<16x256xf32>, i32 -> vector<16x256xf32>
    %c6 = arith.constant 6 : index
    %c0_25 = arith.constant 0 : index
    %61 = vector.load %arg7[%c6, %c0_25] : memref<9x256xf32, #tpu.memory_space<vmem>>, vector<1x256xf32>
    %62 = vector.shape_cast %61 : vector<1x256xf32> to vector<256xf32>
    %63 = vector.shape_cast %62 : vector<256xf32> to vector<1x256xf32>
    %64 = vector.broadcast %63 : vector<1x256xf32> to vector<16x256xf32>
    %65 = arith.mulf %60, %64 : vector<16x256xf32>
    %66 = arith.truncf %65 : vector<16x256xf32> to vector<16x256xbf16>
    %c96 = arith.constant 96 : index
    %c0_26 = arith.constant 0 : index
    %67 = vector.load %arg9[%c96, %c0_26] : memref<144x256xbf16, #tpu.memory_space<vmem>>, vector<16x256xbf16>
    tpu.vector_store %arg9[%c96, %c0_26], %66 {strides = array<i32>} : memref<144x256xbf16, #tpu.memory_space<vmem>>, vector<16x256xbf16>,
    %c240_i32 = arith.constant 240 : i32
    %68 = tpu.dynamic_rotate %17 by %c240_i32 dim 1 : vector<16x256xf32>, i32 -> vector<16x256xf32>
    %c7 = arith.constant 7 : index
    %c0_27 = arith.constant 0 : index
    %69 = vector.load %arg7[%c7, %c0_27] : memref<9x256xf32, #tpu.memory_space<vmem>>, vector<1x256xf32>
    %70 = vector.shape_cast %69 : vector<1x256xf32> to vector<256xf32>
    %71 = vector.shape_cast %70 : vector<256xf32> to vector<1x256xf32>
    %72 = vector.broadcast %71 : vector<1x256xf32> to vector<16x256xf32>
    %73 = arith.mulf %68, %72 : vector<16x256xf32>
    %74 = arith.truncf %73 : vector<16x256xf32> to vector<16x256xbf16>
    %c112 = arith.constant 112 : index
    %c0_28 = arith.constant 0 : index
    %75 = vector.load %arg9[%c112, %c0_28] : memref<144x256xbf16, #tpu.memory_space<vmem>>, vector<16x256xbf16>
    tpu.vector_store %arg9[%c112, %c0_28], %74 {strides = array<i32>} : memref<144x256xbf16, #tpu.memory_space<vmem>>, vector<16x256xbf16>,
    %c239_i32 = arith.constant 239 : i32
    %76 = tpu.dynamic_rotate %17 by %c239_i32 dim 1 : vector<16x256xf32>, i32 -> vector<16x256xf32>
    %c8 = arith.constant 8 : index
    %c0_29 = arith.constant 0 : index
    %77 = vector.load %arg7[%c8, %c0_29] : memref<9x256xf32, #tpu.memory_space<vmem>>, vector<1x256xf32>
    %78 = vector.shape_cast %77 : vector<1x256xf32> to vector<256xf32>
    %79 = vector.shape_cast %78 : vector<256xf32> to vector<1x256xf32>
    %80 = vector.broadcast %79 : vector<1x256xf32> to vector<16x256xf32>
    %81 = arith.mulf %76, %80 : vector<16x256xf32>
    %82 = arith.truncf %81 : vector<16x256xf32> to vector<16x256xbf16>
    %c128 = arith.constant 128 : index
    %c0_30 = arith.constant 0 : index
    %83 = vector.load %arg9[%c128, %c0_30] : memref<144x256xbf16, #tpu.memory_space<vmem>>, vector<16x256xbf16>
    tpu.vector_store %arg9[%c128, %c0_30], %82 {strides = array<i32>} : memref<144x256xbf16, #tpu.memory_space<vmem>>, vector<16x256xbf16>,
    %c0_31 = arith.constant 0 : index
    %c0_32 = arith.constant 0 : index
    %84 = vector.load %arg6[%c0_31, %c0_32] : memref<4x144xbf16, #tpu.memory_space<vmem>>, vector<4x144xbf16>
    %c0_33 = arith.constant 0 : index
    %c0_34 = arith.constant 0 : index
    %85 = vector.load %arg9[%c0_33, %c0_34] : memref<144x256xbf16, #tpu.memory_space<vmem>>, vector<144x256xbf16>
    %cst_35 = arith.constant dense<0.000000e+00> : vector<4x256xf32>
    %86 = tpu.matmul %84, %85, %cst_35 {dimension_numbers = #tpu.dot_dimension_numbers<[1], [0], [0], [1], [0, 0, 1, 1], [], []>} : vector<4x144xbf16>, vector<144x256xbf16>, vector<4x256xf32> -> vector<4x256xf32>
    %c0_36 = arith.constant 0 : index
    %c0_37 = arith.constant 0 : index
    %c0_38 = arith.constant 0 : index
    %87 = vector.load %arg8[%c0_36, %c0_37, %c0_38] : memref<1x8x256xf32, #tpu.memory_space<vmem>>, vector<1x4x256xf32>
    %88 = vector.shape_cast %87 : vector<1x4x256xf32> to vector<4x256xf32>
    %89 = vector.shape_cast %1 : vector<4x256xf32> to vector<1x4x256xf32>
    tpu.vector_store %arg8[%c0_36, %c0_37, %c0_38], %89 {strides = array<i32>} : memref<1x8x256xf32, #tpu.memory_space<vmem>>, vector<1x4x256xf32>,
    %c0_39 = arith.constant 0 : index
    %c4 = arith.constant 4 : index
    %c0_40 = arith.constant 0 : index
    %90 = vector.load %arg8[%c0_39, %c4, %c0_40] : memref<1x8x256xf32, #tpu.memory_space<vmem>>, vector<1x4x256xf32>
    %91 = vector.shape_cast %90 : vector<1x4x256xf32> to vector<4x256xf32>
    %92 = vector.shape_cast %86 : vector<4x256xf32> to vector<1x4x256xf32>
    tpu.vector_store %arg8[%c0_39, %c4, %c0_40], %92 {strides = array<i32>} : memref<1x8x256xf32, #tpu.memory_space<vmem>>, vector<1x4x256xf32>,
    return
  }
  func.func @transform_0(%arg0: i32) -> (i32, i32, i32) {
    %c0_i32 = arith.constant 0 : i32
    %c0_i32_0 = arith.constant 0 : i32
    %c0_i32_1 = arith.constant 0 : i32
    return %arg0, %c0_i32, %c0_i32_0 : i32, i32, i32
  }
  func.func @transform_1(%arg0: i32) -> (i32, i32) {
    %c0_i32 = arith.constant 0 : i32
    %c0_i32_0 = arith.constant 0 : i32
    %c0_i32_1 = arith.constant 0 : i32
    return %c0_i32, %c0_i32_0 : i32, i32
  }
  func.func @transform_2(%arg0: i32) -> (i32, i32) {
    %c0_i32 = arith.constant 0 : i32
    %c0_i32_0 = arith.constant 0 : i32
    %c0_i32_1 = arith.constant 0 : i32
    return %c0_i32, %c0_i32_0 : i32, i32
  }
  func.func @transform_3(%arg0: i32) -> (i32, i32) {
    %c0_i32 = arith.constant 0 : i32
    %c0_i32_0 = arith.constant 0 : i32
    %c0_i32_1 = arith.constant 0 : i32
    return %c0_i32, %c0_i32_0 : i32, i32
  }
  func.func @transform_4(%arg0: i32) -> (i32, i32) {
    %c0_i32 = arith.constant 0 : i32
    %c0_i32_0 = arith.constant 0 : i32
    %c0_i32_1 = arith.constant 0 : i32
    return %c0_i32, %c0_i32_0 : i32, i32
  }
  func.func @transform_5(%arg0: i32) -> (i32, i32) {
    %c0_i32 = arith.constant 0 : i32
    %c0_i32_0 = arith.constant 0 : i32
    %c0_i32_1 = arith.constant 0 : i32
    return %c0_i32, %c0_i32_0 : i32, i32
  }
  func.func @transform_6(%arg0: i32) -> (i32, i32) {
    %c0_i32 = arith.constant 0 : i32
    %c0_i32_0 = arith.constant 0 : i32
    %c0_i32_1 = arith.constant 0 : i32
    return %c0_i32, %c0_i32_0 : i32, i32
  }
  func.func @transform_7(%arg0: i32) -> (i32, i32, i32) {
    %c0_i32 = arith.constant 0 : i32
    %c0_i32_0 = arith.constant 0 : i32
    %c0_i32_1 = arith.constant 0 : i32
    return %arg0, %c0_i32, %c0_i32_0 : i32, i32, i32
  }
}

</mosaic_0001>

<llo_original>
// kernel: bottleneck_block_forward.1
$region0: #{bottleneck_block_forward.1}
  #allocation0 [shape = 'u32[]', space=smem, size = 0x4, offset = 0x4, fixed_abs, tag = 'smem constant byte address 0x4 - core index']
  #allocation1 [shape = 'u32[144,128]{1,0:T(1,128)}', space=vmem, size = 0x12000, scoped, tag = 'internal scratch']
  #allocation2 [shape = 'bf16[144,256]{1,0:T(8,128)(2,1)}', space=vmem, size = 0x12000, scoped, tag = 'scratch operand']
  %s0 = inlined_call_operand.vmem [shape: f32[2,4,256], index: 0, kind: input, shape index: {}]
  %s1 = inlined_call_operand.vmem [shape: f32[4,1], index: 1, kind: input, shape index: {}]
  %s2 = inlined_call_operand.vmem [shape: f32[4,1], index: 2, kind: input, shape index: {}]
  %s3 = inlined_call_operand.vmem [shape: bf16[16,4], index: 3, kind: input, shape index: {}]
  %s4 = inlined_call_operand.vmem [shape: f32[16,1], index: 4, kind: input, shape index: {}]
  %s5 = inlined_call_operand.vmem [shape: bf16[4,144], index: 5, kind: input, shape index: {}]
  %s6 = inlined_call_operand.vmem [shape: f32[9,256], index: 6, kind: input, shape index: {}]
  %s7 = inlined_call_operand.vmem [shape: f32[2,8,256], index: 7, kind: output, shape index: {}]
  %s8 = sld [smem:[#allocation0]]
  $region61: #{bottleneck_block_forward.1} parent=0
    _
  %s10 = ssub.s32 1, %s8
  %s11 = scalar_select 0, %s10, %s8
  loop: start=0, step=1, limit=4
  $region2: #{bottleneck_block_forward.1} parent=0 // loop_pre_header
    _
  $region3: #{bottleneck_block_forward.1} parent=0 // loop_header
    %s13 = sphi 0, %s17
    %p14 = scmp.ge.s32.totalorder %s13, 4
    %s23 = sphi 0, %s25
    %s26 = sphi 0, %s23
    %s27 = sphi 0, %s26
    %s43 = sphi 0, %s27
    %s47 = sphi 0, %s47
    %s49 = sphi 0, %s47
    %s50 = sphi 0, %s49
    %s64 = sphi 0, %s50
    %s68 = sphi 0, %s68
    %s70 = sphi 0, %s68
    %s71 = sphi 0, %s70
    %s85 = sphi 0, %s71
    %s89 = sphi 0, %s89
    %s91 = sphi 0, %s89
    %s92 = sphi 0, %s91
    %s106 = sphi 0, %s92
    %s110 = sphi 0, %s110
    %s112 = sphi 0, %s110
    %s113 = sphi 0, %s112
    %s127 = sphi 0, %s113
    %s131 = sphi 0, %s131
    %s133 = sphi 0, %s131
    %s134 = sphi 0, %s133
    %s148 = sphi 0, %s134
    %s152 = sphi 0, %s152
    %s154 = sphi 0, %s152
    %s155 = sphi 0, %s154
    %s169 = sphi 0, %s155
    %s175 = sphi 0, %s177
    %s178 = sphi 0, %s175
    %s179 = sphi 0, %s178
    %s195 = sphi 0, %s179
  $region4: #{bottleneck_block_forward.1} parent=0 // loop_header_branch
    %16 = sbr.rel (%p14) target = $region8
  $region5: #{bottleneck_block_forward.1} parent=0 // loop_body
    %s18 = ssub.s32 %s13, 1
    %s19 = ssub.s32 %s13, 2
    %s20 = sadd.s32 %s13, 1
    %s21 = ssub.s32 %s13, %s20
    %p22 = scmp.eq.s32.totalorder %s21, 0
    %s24 = sadd.s32 %s23, 1
    %s25 = scalar_select %p22, %s23, %s24
    %p28 = pneg %p22
    %p29 = scmp.eq.s32.totalorder %s13, 1
    %p30 = por %p28, %p29
    %p31 = scmp.ne.s32.totalorder %s23, %s26
    %p32 = scmp.eq.s32.totalorder %s13, 0
    %p33 = por %p31, %p32
    %p34 = scmp.ne.s32.totalorder %s23, %s26
    %p35 = scmp.eq.s32.totalorder %s18, 1
    %p36 = por %p34, %p35
    %p37 = scmp.ne.s32.totalorder %s26, %s27
    %p38 = scmp.eq.s32.totalorder %s18, 0
    %p39 = por %p37, %p38
    %p40 = scmp.ne.s32.totalorder %s26, %s27
    %p41 = scmp.eq.s32.totalorder %s19, 1
    %p42 = por %p40, %p41
    %p44 = scmp.ne.s32.totalorder %s27, %s43
    %p45 = scmp.eq.s32.totalorder %s19, 0
    %p46 = por %p44, %p45
    %s48 = sadd.s32 %s47, 1
    %p51 = scmp.eq.s32.totalorder %s13, 1
    %p52 = scmp.ne.s32.totalorder %s47, %s49
    %p53 = scmp.eq.s32.totalorder %s13, 0
    %p54 = por %p52, %p53
    %p55 = scmp.ne.s32.totalorder %s47, %s49
    %p56 = scmp.eq.s32.totalorder %s18, 1
    %p57 = por %p55, %p56
    %p58 = scmp.ne.s32.totalorder %s49, %s50
    %p59 = scmp.eq.s32.totalorder %s18, 0
    %p60 = por %p58, %p59
    %p61 = scmp.ne.s32.totalorder %s49, %s50
    %p62 = scmp.eq.s32.totalorder %s19, 1
    %p63 = por %p61, %p62
    %p65 = scmp.ne.s32.totalorder %s50, %s64
    %p66 = scmp.eq.s32.totalorder %s19, 0
    %p67 = por %p65, %p66
    %s69 = sadd.s32 %s68, 1
    %p72 = scmp.eq.s32.totalorder %s13, 1
    %p73 = scmp.ne.s32.totalorder %s68, %s70
    %p74 = scmp.eq.s32.totalorder %s13, 0
    %p75 = por %p73, %p74
    %p76 = scmp.ne.s32.totalorder %s68, %s70
    %p77 = scmp.eq.s32.totalorder %s18, 1
    %p78 = por %p76, %p77
    %p79 = scmp.ne.s32.totalorder %s70, %s71
    %p80 = scmp.eq.s32.totalorder %s18, 0
    %p81 = por %p79, %p80
    %p82 = scmp.ne.s32.totalorder %s70, %s71
    %p83 = scmp.eq.s32.totalorder %s19, 1
    %p84 = por %p82, %p83
    %p86 = scmp.ne.s32.totalorder %s71, %s85
    %p87 = scmp.eq.s32.totalorder %s19, 0
    %p88 = por %p86, %p87
    %s90 = sadd.s32 %s89, 1
    %p93 = scmp.eq.s32.totalorder %s13, 1
    %p94 = scmp.ne.s32.totalorder %s89, %s91
    %p95 = scmp.eq.s32.totalorder %s13, 0
    %p96 = por %p94, %p95
    %p97 = scmp.ne.s32.totalorder %s89, %s91
    %p98 = scmp.eq.s32.totalorder %s18, 1
    %p99 = por %p97, %p98
    %p100 = scmp.ne.s32.totalorder %s91, %s92
    %p101 = scmp.eq.s32.totalorder %s18, 0
    %p102 = por %p100, %p101
    %p103 = scmp.ne.s32.totalorder %s91, %s92
    %p104 = scmp.eq.s32.totalorder %s19, 1
    %p105 = por %p103, %p104
    %p107 = scmp.ne.s32.totalorder %s92, %s106
    %p108 = scmp.eq.s32.totalorder %s19, 0
    %p109 = por %p107, %p108
    %s111 = sadd.s32 %s110, 1
    %p114 = scmp.eq.s32.totalorder %s13, 1
    %p115 = scmp.ne.s32.totalorder %s110, %s112
    %p116 = scmp.eq.s32.totalorder %s13, 0
    %p117 = por %p115, %p116
    %p118 = scmp.ne.s32.totalorder %s110, %s112
    %p119 = scmp.eq.s32.totalorder %s18, 1
    %p120 = por %p118, %p119
    %p121 = scmp.ne.s32.totalorder %s112, %s113
    %p122 = scmp.eq.s32.totalorder %s18, 0
    %p123 = por %p121, %p122
    %p124 = scmp.ne.s32.totalorder %s112, %s113
    %p125 = scmp.eq.s32.totalorder %s19, 1
    %p126 = por %p124, %p125
    %p128 = scmp.ne.s32.totalorder %s113, %s127
    %p129 = scmp.eq.s32.totalorder %s19, 0
    %p130 = por %p128, %p129
    %s132 = sadd.s32 %s131, 1
    %p135 = scmp.eq.s32.totalorder %s13, 1
    %p136 = scmp.ne.s32.totalorder %s131, %s133
    %p137 = scmp.eq.s32.totalorder %s13, 0
    %p138 = por %p136, %p137
    %p139 = scmp.ne.s32.totalorder %s131, %s133
    %p140 = scmp.eq.s32.totalorder %s18, 1
    %p141 = por %p139, %p140
    %p142 = scmp.ne.s32.totalorder %s133, %s134
    %p143 = scmp.eq.s32.totalorder %s18, 0
    %p144 = por %p142, %p143
    %p145 = scmp.ne.s32.totalorder %s133, %s134
    %p146 = scmp.eq.s32.totalorder %s19, 1
    %p147 = por %p145, %p146
    %p149 = scmp.ne.s32.totalorder %s134, %s148
    %p150 = scmp.eq.s32.totalorder %s19, 0
    %p151 = por %p149, %p150
    %s153 = sadd.s32 %s152, 1
    %p156 = scmp.eq.s32.totalorder %s13, 1
    %p157 = scmp.ne.s32.totalorder %s152, %s154
    %p158 = scmp.eq.s32.totalorder %s13, 0
    %p159 = por %p157, %p158
    %p160 = scmp.ne.s32.totalorder %s152, %s154
    %p161 = scmp.eq.s32.totalorder %s18, 1
    %p162 = por %p160, %p161
    %p163 = scmp.ne.s32.totalorder %s154, %s155
    %p164 = scmp.eq.s32.totalorder %s18, 0
    %p165 = por %p163, %p164
    %p166 = scmp.ne.s32.totalorder %s154, %s155
    %p167 = scmp.eq.s32.totalorder %s19, 1
    %p168 = por %p166, %p167
    %p170 = scmp.ne.s32.totalorder %s155, %s169
    %p171 = scmp.eq.s32.totalorder %s19, 0
    %p172 = por %p170, %p171
    %s173 = ssub.s32 %s13, %s20
    %p174 = scmp.eq.s32.totalorder %s173, 0
    %s176 = sadd.s32 %s175, 1
    %s177 = scalar_select %p174, %s175, %s176
    %p180 = pneg %p174
    %p181 = scmp.eq.s32.totalorder %s13, 1
    %p182 = por %p180, %p181
    %p183 = scmp.ne.s32.totalorder %s175, %s178
    %p184 = scmp.eq.s32.totalorder %s13, 0
    %p185 = por %p183, %p184
    %p186 = scmp.ne.s32.totalorder %s175, %s178
    %p187 = scmp.eq.s32.totalorder %s18, 1
    %p188 = por %p186, %p187
    %p189 = scmp.ne.s32.totalorder %s178, %s179
    %p190 = scmp.eq.s32.totalorder %s18, 0
    %p191 = por %p189, %p190
    %p192 = scmp.ne.s32.totalorder %s178, %s179
    %p193 = scmp.eq.s32.totalorder %s19, 1
    %p194 = por %p192, %p193
    %p196 = scmp.ne.s32.totalorder %s179, %s195
    %p197 = scmp.eq.s32.totalorder %s19, 0
    %p198 = por %p196, %p197
    %p199 = scmp.le.s32.totalorder 1, %s13
    %p200 = scmp.lt.s32.totalorder %s13, 3
    %p201 = pnand %p199, %p200
    %p202 = pneg %p201
    // Predicated region
    $region9: #{bottleneck_block_forward.1} parent=5 // pred_check
      _
    $region10: #{bottleneck_block_forward.1} parent=5 // pred_check_branch
      %204 = sbr.rel (%p201) target = $region12
    $region11: #{bottleneck_block_forward.1} parent=5 // pred_region
      %s205 = ssub.s32 %s13, 1
      // Predicated region
      $region13: #{bottleneck_block_forward.1} parent=11 // pred_check
        %p206 = pneg %p60
      $region14: #{bottleneck_block_forward.1} parent=11 // pred_check_branch
        %208 = sbr.rel (%p206) target = $region16
      $region15: #{bottleneck_block_forward.1} parent=11 // pred_region
        _
      $region16: #{bottleneck_block_forward.1} parent=11 // pred_fallthru
        _
      // Predicated region
      $region17: #{bottleneck_block_forward.1} parent=11 // pred_check
        %p209 = pneg %p81
      $region18: #{bottleneck_block_forward.1} parent=11 // pred_check_branch
        %211 = sbr.rel (%p209) target = $region20
      $region19: #{bottleneck_block_forward.1} parent=11 // pred_region
        _
      $region20: #{bottleneck_block_forward.1} parent=11 // pred_fallthru
        _
      // Predicated region
      $region21: #{bottleneck_block_forward.1} parent=11 // pred_check
        %p212 = pneg %p102
      $region22: #{bottleneck_block_forward.1} parent=11 // pred_check_branch
        %214 = sbr.rel (%p212) target = $region24
      $region23: #{bottleneck_block_forward.1} parent=11 // pred_region
        _
      $region24: #{bottleneck_block_forward.1} parent=11 // pred_fallthru
        _
      // Predicated region
      $region25: #{bottleneck_block_forward.1} parent=11 // pred_check
        %p215 = pneg %p123
      $region26: #{bottleneck_block_forward.1} parent=11 // pred_check_branch
        %217 = sbr.rel (%p215) target = $region28
      $region27: #{bottleneck_block_forward.1} parent=11 // pred_region
        _
      $region28: #{bottleneck_block_forward.1} parent=11 // pred_fallthru
        _
      // Predicated region
      $region29: #{bottleneck_block_forward.1} parent=11 // pred_check
        %p218 = pneg %p144
      $region30: #{bottleneck_block_forward.1} parent=11 // pred_check_branch
        %220 = sbr.rel (%p218) target = $region32
      $region31: #{bottleneck_block_forward.1} parent=11 // pred_region
        _
      $region32: #{bottleneck_block_forward.1} parent=11 // pred_fallthru
        _
      // Predicated region
      $region33: #{bottleneck_block_forward.1} parent=11 // pred_check
        %p221 = pneg %p165
      $region34: #{bottleneck_block_forward.1} parent=11 // pred_check_branch
        %223 = sbr.rel (%p221) target = $region36
      $region35: #{bottleneck_block_forward.1} parent=11 // pred_region
        _
      $region36: #{bottleneck_block_forward.1} parent=11 // pred_fallthru
        _
    $region12: #{bottleneck_block_forward.1} parent=5 // pred_fallthru
      _
    %p224 = scmp.lt.s32.totalorder %s13, 2
    // Predicated region
    $region37: #{bottleneck_block_forward.1} parent=5 // pred_check
      %p225 = pneg %p224
    $region38: #{bottleneck_block_forward.1} parent=5 // pred_check_branch
      %227 = sbr.rel (%p225) target = $region40
    $region39: #{bottleneck_block_forward.1} parent=5 // pred_region
      // Predicated region
      $region41: #{bottleneck_block_forward.1} parent=39 // pred_check
        %p228 = pneg %p33
      $region42: #{bottleneck_block_forward.1} parent=39 // pred_check_branch
        %230 = sbr.rel (%p228) target = $region44
      $region43: #{bottleneck_block_forward.1} parent=39 // pred_region
        %p231 = scmp.lt.s32.totalorder %s13, 1
        %s232 = scalar_select %p231, %s13, 1
        %s233 = smul.addr %s232, 2
        %s234 = smul.addr %s233, 4
        %s235 = scalar_lea.vmem %s0, %s234
      $region44: #{bottleneck_block_forward.1} parent=39 // pred_fallthru
        _
    $region40: #{bottleneck_block_forward.1} parent=5 // pred_fallthru
      _
    %p236 = scmp.le.s32.totalorder 1, %s13
    %p237 = scmp.lt.s32.totalorder %s13, 3
    %p238 = pnand %p236, %p237
    %p239 = pneg %p238
    // Predicated region
    $region45: #{bottleneck_block_forward.1} parent=5 // pred_check
      _
    $region46: #{bottleneck_block_forward.1} parent=5 // pred_check_branch
      %241 = sbr.rel (%p238) target = $region48
    $region47: #{bottleneck_block_forward.1} parent=5 // pred_region
      %s242 = ssub.s32 %s13, 1
      %p243 = scmp.lt.s32.totalorder %s18, 1
      %s244 = scalar_select %p243, %s18, 1
      %s245 = smul.addr %s244, 2
      %s246 = smul.addr %s245, 4
      %s247 = scalar_lea.vmem %s0, %s246
      %p248 = pneg %p39
      %p249 = pneg %p36
      %p250 = pneg %p60
      %p251 = pneg %p57
      %p252 = pneg %p81
      %p253 = pneg %p78
      %p254 = pneg %p102
      %p255 = pneg %p99
      %p256 = pneg %p123
      %p257 = pneg %p120
      %p258 = pneg %p144
      %p259 = pneg %p141
      %p260 = pneg %p165
      %p261 = pneg %p162
      %p262 = pneg %p191
      %p263 = pneg %p188
      %p264 = scmp.lt.s32.totalorder %s18, 1
      %s265 = scalar_select %p264, %s18, 1
      %s266 = smul.addr %s265, 2
      %s267 = smul.addr %s266, 8
      %s268 = scalar_lea.vmem %s7, %s267
      %p269 = scmp.lt.s32.totalorder %s18, 1
      %s270 = scalar_select %p269, %s18, 1
      %s271 = smul.addr %s270, 2
      %s272 = smul.addr %s271, 4
      %s273 = scalar_lea.vmem %s0, %s272
      %p274 = scmp.lt.s32.totalorder %s18, 1
      %s275 = scalar_select %p274, %s18, 1
      %s276 = smul.addr %s275, 2
      %s277 = smul.addr %s276, 8
      %s278 = scalar_lea.vmem %s7, %s277
      %v280 = vld [vmem:[%s273] sm:$0xff]
      %v281 = vld [vmem:[%s1] sm:$0xf]
      %283 = vset.pattern.permute.xlu0 0
      %284 = vperm.xlu0 %283, %v281
      %v285 = vpop.permute.xlu0 %284
      %v287 = vunpack.c.l.s4 839922192
      %v288 = vunpack.c.0.s8 %v287
      %v289 = vlaneseq
      %v290 = vshrl.u32 %v289, 7
      %v291 = vsub.s32 %v288, %v290
      %v292 = vrot.slane %v285, %v291
      %v294 = vmul.f32 %v280, %v292
      %v295 = vld [vmem:[%s2] sm:$0xf]
      %297 = vset.pattern.permute.xlu0 0
      %298 = vperm.xlu0 %297, %v295
      %v299 = vpop.permute.xlu0 %298
      %v301 = vunpack.c.l.s4 839922192
      %v302 = vunpack.c.0.s8 %v301
      %v303 = vlaneseq
      %v304 = vshrl.u32 %v303, 7
      %v305 = vsub.s32 %v302, %v304
      %v306 = vrot.slane %v299, %v305
      %v308 = vadd.f32 %v294, %v306
      %v309 = vmax.f32 %v308, 0.0
      %v310 = vld [vmem:[%s3] sm:$0xf]
      %v311 = vld [vmem:[%s3 + $0x4] sm:$0xf]
      %v313 = vcombine.high %v309, %v309
      %v315 = vpack.c.bf16 %v309, %v309
      %v316 = vpack.c.bf16 %v313, %v313
      %v317 = vld [vmem:[%s4] sm:$0xff]
      %v318 = vld [vmem:[%s4 + $0x8] sm:$0xff]
      %320 = vset.pattern.permute.xlu0 0
      %321 = vperm.xlu0 %320, %v317
      %v322 = vpop.permute.xlu0 %321
      %325 = vset.pattern.permute.xlu0 0
      %326 = vperm.xlu0 %325, %v318
      %v327 = vpop.permute.xlu0 %326
      %v331 = vunpack.c.l.b16 %v310
      %v332 = vunpack.c.l.b16 %v311
      %v333 = vpack.c.b16 %v332, %v331
      %vm334 = vcmask 31744
      %v336 = vsel %vm334, %v333, 0
      %vm338 = vcmask 1041408
      %v340 = vsel %vm338, %v315, 0
      %v343 = vsel %vm338, %v316, 0
      %345 = vmatprep.subr.bf16.mxu0 0
      %346 = vmatpush1.bf16.msra.mxu0 0
      %347 = vmatprep.subr.bf16.mxu0 0
      %348 = vmatpush1.bf16.msra.mxu0 0
      %349 = vmatprep.subr.bf16.mxu0 0
      %350 = vmatpush1.bf16.msra.mxu0 0
      %351 = vmatprep.subr.bf16.mxu0 0
      %352 = vmatpush1.bf16.msra.mxu0 0
      %353 = vmatprep.subr.bf16.mxu0 0
      %354 = vmatpush1.bf16.msra.mxu0 0
      %355 = vmatprep.subr.bf16.mxu0 0
      %356 = vmatpush1.bf16.msra.mxu0 0
      %357 = vmatprep.subr.bf16.mxu0 0
      %358 = vmatpush1.bf16.msra.mxu0 0
      %359 = vmatprep.subr.bf16.mxu0 %v343
      %360 = vmatpush1.bf16.msra.mxu0 %v340
      %361 = vmatprep.subr.bf16.mxu0 0
      %362 = vmatpush2.bf16.msra.mxu0 0
      %363 = vmatprep.subr.bf16.mxu0 0
      %364 = vmatpush2.bf16.msra.mxu0 0
      %365 = vmatprep.subr.bf16.mxu0 0
      %366 = vmatpush2.bf16.msra.mxu0 0
      %367 = vmatprep.subr.bf16.mxu0 0
      %368 = vmatpush2.bf16.msra.mxu0 0
      %369 = vmatprep.subr.bf16.mxu0 0
      %370 = vmatpush2.bf16.msra.mxu0 0
      %371 = vmatprep.subr.bf16.mxu0 0
      %372 = vmatpush2.bf16.msra.mxu0 0
      %373 = vmatprep.subr.bf16.mxu0 0
      %374 = vmatpush2.bf16.msra.mxu0 0
      %375 = vmatprep.subr.bf16.mxu0 0
      %376 = vmatpush2.bf16.msra.mxu0 0
      %377 = vmatprep.mubr.bf16.mxu0 0
      %378 = vmatmul.mubr.bf16.gmra.mxu0 %v336
      %v379 = vpop.f32.mrf.mxu0
      %v380 = vadd.f32 %v322, %v379
      %v381 = vpop.f32.mrf.mxu0
      %v382 = vadd.f32 %v322, %v381
      %v383 = vpop.f32.mrf.mxu0
      %v384 = vadd.f32 %v327, %v383
      %v385 = vpop.f32.mrf.mxu0
      %v386 = vadd.f32 %v327, %v385
      %387 = vdwg.mxu0
      %v388 = vmax.f32 %v380, 0.0
      %v389 = vmax.f32 %v382, 0.0
      %v390 = vmax.f32 %v384, 0.0
      %v391 = vmax.f32 %v386, 0.0
      %392 = vrot.lane.b32.xlu0 %v388, 17
      %v393 = vpop.permute.xlu0 %392
      %394 = vrot.lane.b32.xlu0 %v390, 17
      %v395 = vpop.permute.xlu0 %394
      %396 = vrot.lane.b32.xlu0 %v389, 17
      %v397 = vpop.permute.xlu0 %396
      %398 = vrot.lane.b32.xlu0 %v391, 17
      %v399 = vpop.permute.xlu0 %398
      %v400 = vlaneseq
      %v401 = vand.u32 %v400, 127
      %vm402 = vcmp.lt.s32.totalorder %v401, 17
      %v403 = vsel %vm402, %v393, %v397
      %v404 = vsel %vm402, %v395, %v399
      %v405 = vsel %vm402, %v397, %v393
      %v406 = vsel %vm402, %v399, %v395
      %v407 = vld [vmem:[%s6] ss:$8 sm:$0x3]
      %v409 = vlaneseq
      %v410 = vshrl.u32 %v409, 7
      %v411 = vsub.s32 0, %v410
      %v412 = vrot.slane %v407, %v411
      %v413 = vlaneseq
      %v414 = vshrl.u32 %v413, 7
      %v415 = vsub.s32 1, %v414
      %v416 = vrot.slane %v407, %v415
      %v419 = vmul.f32 %v405, %v412
      %v420 = vmul.f32 %v403, %v416
      %v421 = vmul.f32 %v406, %v412
      %v422 = vmul.f32 %v404, %v416
      %v423 = vpack.c.bf16 %v421, %v419
      %v424 = vpack.c.bf16 %v422, %v420
      %v427 = vunpack.c.l.b16 %v423
      %v428 = vunpack.c.l.b16 %v424
      %v429 = vunpack.c.h.b16 %v423
      %v430 = vunpack.c.h.b16 %v424
      %v431 = vpack.c.b16 %v428, %v427
      %v432 = vpack.c.b16 %v430, %v429
      %435 = vst [vmem:[#allocation2] sm:$0xff] %v431
      %436 = vst [vmem:[#allocation2 + $0x8] sm:$0xff] %v432
      %437 = vrot.lane.b32.xlu0 %v388, 16
      %v438 = vpop.permute.xlu0 %437
      %439 = vrot.lane.b32.xlu0 %v390, 16
      %v440 = vpop.permute.xlu0 %439
      %441 = vrot.lane.b32.xlu0 %v389, 16
      %v442 = vpop.permute.xlu0 %441
      %443 = vrot.lane.b32.xlu0 %v391, 16
      %v444 = vpop.permute.xlu0 %443
      %vm445 = vcmp.lt.s32.totalorder %v401, 16
      %v446 = vsel %vm445, %v438, %v442
      %v447 = vsel %vm445, %v440, %v444
      %v448 = vsel %vm445, %v442, %v438
      %v449 = vsel %vm445, %v444, %v440
      %s450 = scalar_lea.vmem %s6, 1
      %v451 = vld [vmem:[%s450] ss:$8 sm:$0x3]
      %v453 = vlaneseq
      %v454 = vshrl.u32 %v453, 7
      %v455 = vsub.s32 0, %v454
      %v456 = vrot.slane %v451, %v455
      %v457 = vlaneseq
      %v458 = vshrl.u32 %v457, 7
      %v459 = vsub.s32 1, %v458
      %v460 = vrot.slane %v451, %v459
      %v463 = vmul.f32 %v448, %v456
      %v464 = vmul.f32 %v446, %v460
      %v465 = vmul.f32 %v449, %v456
      %v466 = vmul.f32 %v447, %v460
      %v467 = vpack.c.bf16 %v465, %v463
      %v468 = vpack.c.bf16 %v466, %v464
      %v471 = vunpack.c.l.b16 %v467
      %v472 = vunpack.c.l.b16 %v468
      %v473 = vunpack.c.h.b16 %v467
      %v474 = vunpack.c.h.b16 %v468
      %v475 = vpack.c.b16 %v472, %v471
      %v476 = vpack.c.b16 %v474, %v473
      %479 = vst [vmem:[#allocation2 + $0x10] sm:$0xff] %v475
      %480 = vst [vmem:[#allocation2 + $0x18] sm:$0xff] %v476
      %481 = vrot.lane.b32.xlu0 %v388, 15
      %v482 = vpop.permute.xlu0 %481
      %483 = vrot.lane.b32.xlu0 %v390, 15
      %v484 = vpop.permute.xlu0 %483
      %485 = vrot.lane.b32.xlu0 %v389, 15
      %v486 = vpop.permute.xlu0 %485
      %487 = vrot.lane.b32.xlu0 %v391, 15
      %v488 = vpop.permute.xlu0 %487
      %vm489 = vcmp.lt.s32.totalorder %v401, 15
      %v490 = vsel %vm489, %v482, %v486
      %v491 = vsel %vm489, %v484, %v488
      %v492 = vsel %vm489, %v486, %v482
      %v493 = vsel %vm489, %v488, %v484
      %s494 = scalar_lea.vmem %s6, 2
      %v495 = vld [vmem:[%s494] ss:$8 sm:$0x3]
      %v497 = vlaneseq
      %v498 = vshrl.u32 %v497, 7
      %v499 = vsub.s32 0, %v498
      %v500 = vrot.slane %v495, %v499
      %v501 = vlaneseq
      %v502 = vshrl.u32 %v501, 7
      %v503 = vsub.s32 1, %v502
      %v504 = vrot.slane %v495, %v503
      %v507 = vmul.f32 %v492, %v500
      %v508 = vmul.f32 %v490, %v504
      %v509 = vmul.f32 %v493, %v500
      %v510 = vmul.f32 %v491, %v504
      %v511 = vpack.c.bf16 %v509, %v507
      %v512 = vpack.c.bf16 %v510, %v508
      %v515 = vunpack.c.l.b16 %v511
      %v516 = vunpack.c.l.b16 %v512
      %v517 = vunpack.c.h.b16 %v511
      %v518 = vunpack.c.h.b16 %v512
      %v519 = vpack.c.b16 %v516, %v515
      %v520 = vpack.c.b16 %v518, %v517
      %523 = vst [vmem:[#allocation2 + $0x20] sm:$0xff] %v519
      %524 = vst [vmem:[#allocation2 + $0x28] sm:$0xff] %v520
      %525 = vrot.lane.b32.xlu0 %v388, 1
      %v526 = vpop.permute.xlu0 %525
      %527 = vrot.lane.b32.xlu0 %v390, 1
      %v528 = vpop.permute.xlu0 %527
      %529 = vrot.lane.b32.xlu0 %v389, 1
      %v530 = vpop.permute.xlu0 %529
      %531 = vrot.lane.b32.xlu0 %v391, 1
      %v532 = vpop.permute.xlu0 %531
      %vm533 = vcmp.lt.s32.totalorder %v401, 1
      %v534 = vsel %vm533, %v526, %v530
      %v535 = vsel %vm533, %v528, %v532
      %v536 = vsel %vm533, %v530, %v526
      %v537 = vsel %vm533, %v532, %v528
      %s538 = scalar_lea.vmem %s6, 3
      %v539 = vld [vmem:[%s538] ss:$8 sm:$0x3]
      %v541 = vlaneseq
      %v542 = vshrl.u32 %v541, 7
      %v543 = vsub.s32 0, %v542
      %v544 = vrot.slane %v539, %v543
      %v545 = vlaneseq
      %v546 = vshrl.u32 %v545, 7
      %v547 = vsub.s32 1, %v546
      %v548 = vrot.slane %v539, %v547
      %v551 = vmul.f32 %v536, %v544
      %v552 = vmul.f32 %v534, %v548
      %v553 = vmul.f32 %v537, %v544
      %v554 = vmul.f32 %v535, %v548
      %v555 = vpack.c.bf16 %v553, %v551
      %v556 = vpack.c.bf16 %v554, %v552
      %v559 = vunpack.c.l.b16 %v555
      %v560 = vunpack.c.l.b16 %v556
      %v561 = vunpack.c.h.b16 %v555
      %v562 = vunpack.c.h.b16 %v556
      %v563 = vpack.c.b16 %v560, %v559
      %v564 = vpack.c.b16 %v562, %v561
      %567 = vst [vmem:[#allocation2 + $0x30] sm:$0xff] %v563
      %568 = vst [vmem:[#allocation2 + $0x38] sm:$0xff] %v564
      %v569 = vpack.c.bf16 %v390, %v388
      %v570 = vpack.c.bf16 %v391, %v389
      %v573 = vunpack.c.l.b16 %v569
      %v574 = vunpack.c.l.b16 %v570
      %v575 = vunpack.c.h.b16 %v569
      %v576 = vunpack.c.h.b16 %v570
      %v577 = vpack.c.b16 %v574, %v573
      %v578 = vpack.c.b16 %v576, %v575
      %581 = vst [vmem:[#allocation2 + $0x40] sm:$0xff] %v577
      %582 = vst [vmem:[#allocation2 + $0x48] sm:$0xff] %v578
      %583 = vrot.lane.b32.xlu0 %v388, 127
      %v584 = vpop.permute.xlu0 %583
      %585 = vrot.lane.b32.xlu0 %v390, 127
      %v586 = vpop.permute.xlu0 %585
      %587 = vrot.lane.b32.xlu0 %v389, 127
      %v588 = vpop.permute.xlu0 %587
      %589 = vrot.lane.b32.xlu0 %v391, 127
      %v590 = vpop.permute.xlu0 %589
      %vm591 = vcmp.lt.s32.totalorder %v401, 127
      %v592 = vsel %vm591, %v584, %v588
      %v593 = vsel %vm591, %v586, %v590
      %v594 = vsel %vm591, %v588, %v584
      %v595 = vsel %vm591, %v590, %v586
      %s596 = scalar_lea.vmem %s6, 5
      %v597 = vld [vmem:[%s596] ss:$8 sm:$0x3]
      %v599 = vlaneseq
      %v600 = vshrl.u32 %v599, 7
      %v601 = vsub.s32 0, %v600
      %v602 = vrot.slane %v597, %v601
      %v603 = vlaneseq
      %v604 = vshrl.u32 %v603, 7
      %v605 = vsub.s32 1, %v604
      %v606 = vrot.slane %v597, %v605
      %v609 = vmul.f32 %v592, %v602
      %v610 = vmul.f32 %v594, %v606
      %v611 = vmul.f32 %v593, %v602
      %v612 = vmul.f32 %v595, %v606
      %v613 = vpack.c.bf16 %v611, %v609
      %v614 = vpack.c.bf16 %v612, %v610
      %v617 = vunpack.c.l.b16 %v613
      %v618 = vunpack.c.l.b16 %v614
      %v619 = vunpack.c.h.b16 %v613
      %v620 = vunpack.c.h.b16 %v614
      %v621 = vpack.c.b16 %v618, %v617
      %v622 = vpack.c.b16 %v620, %v619
      %625 = vst [vmem:[#allocation2 + $0x50] sm:$0xff] %v621
      %626 = vst [vmem:[#allocation2 + $0x58] sm:$0xff] %v622
      %627 = vrot.lane.b32.xlu0 %v388, 113
      %v628 = vpop.permute.xlu0 %627
      %629 = vrot.lane.b32.xlu0 %v390, 113
      %v630 = vpop.permute.xlu0 %629
      %631 = vrot.lane.b32.xlu0 %v389, 113
      %v632 = vpop.permute.xlu0 %631
      %633 = vrot.lane.b32.xlu0 %v391, 113
      %v634 = vpop.permute.xlu0 %633
      %vm635 = vcmp.lt.s32.totalorder %v401, 113
      %v636 = vsel %vm635, %v628, %v632
      %v637 = vsel %vm635, %v630, %v634
      %v638 = vsel %vm635, %v632, %v628
      %v639 = vsel %vm635, %v634, %v630
      %s640 = scalar_lea.vmem %s6, 6
      %v641 = vld [vmem:[%s640] ss:$8 sm:$0x3]
      %v643 = vlaneseq
      %v644 = vshrl.u32 %v643, 7
      %v645 = vsub.s32 0, %v644
      %v646 = vrot.slane %v641, %v645
      %v647 = vlaneseq
      %v648 = vshrl.u32 %v647, 7
      %v649 = vsub.s32 1, %v648
      %v650 = vrot.slane %v641, %v649
      %v653 = vmul.f32 %v636, %v646
      %v654 = vmul.f32 %v638, %v650
      %v655 = vmul.f32 %v637, %v646
      %v656 = vmul.f32 %v639, %v650
      %v657 = vpack.c.bf16 %v655, %v653
      %v658 = vpack.c.bf16 %v656, %v654
      %v661 = vunpack.c.l.b16 %v657
      %v662 = vunpack.c.l.b16 %v658
      %v663 = vunpack.c.h.b16 %v657
      %v664 = vunpack.c.h.b16 %v658
      %v665 = vpack.c.b16 %v662, %v661
      %v666 = vpack.c.b16 %v664, %v663
      %669 = vst [vmem:[#allocation2 + $0x60] sm:$0xff] %v665
      %670 = vst [vmem:[#allocation2 + $0x68] sm:$0xff] %v666
      %671 = vrot.lane.b32.xlu0 %v388, 112
      %v672 = vpop.permute.xlu0 %671
      %673 = vrot.lane.b32.xlu0 %v390, 112
      %v674 = vpop.permute.xlu0 %673
      %675 = vrot.lane.b32.xlu0 %v389, 112
      %v676 = vpop.permute.xlu0 %675
      %677 = vrot.lane.b32.xlu0 %v391, 112
      %v678 = vpop.permute.xlu0 %677
      %vm679 = vcmp.lt.s32.totalorder %v401, 112
      %v680 = vsel %vm679, %v672, %v676
      %v681 = vsel %vm679, %v674, %v678
      %v682 = vsel %vm679, %v676, %v672
      %v683 = vsel %vm679, %v678, %v674
      %s684 = scalar_lea.vmem %s6, 7
      %v685 = vld [vmem:[%s684] ss:$8 sm:$0x3]
      %v687 = vlaneseq
      %v688 = vshrl.u32 %v687, 7
      %v689 = vsub.s32 0, %v688
      %v690 = vrot.slane %v685, %v689
      %v691 = vlaneseq
      %v692 = vshrl.u32 %v691, 7
      %v693 = vsub.s32 1, %v692
      %v694 = vrot.slane %v685, %v693
      %v697 = vmul.f32 %v680, %v690
      %v698 = vmul.f32 %v682, %v694
      %v699 = vmul.f32 %v681, %v690
      %v700 = vmul.f32 %v683, %v694
      %v701 = vpack.c.bf16 %v699, %v697
      %v702 = vpack.c.bf16 %v700, %v698
      %v705 = vunpack.c.l.b16 %v701
      %v706 = vunpack.c.l.b16 %v702
      %v707 = vunpack.c.h.b16 %v701
      %v708 = vunpack.c.h.b16 %v702
      %v709 = vpack.c.b16 %v706, %v705
      %v710 = vpack.c.b16 %v708, %v707
      %713 = vst [vmem:[#allocation2 + $0x70] sm:$0xff] %v709
      %714 = vst [vmem:[#allocation2 + $0x78] sm:$0xff] %v710
      %715 = vrot.lane.b32.xlu0 %v388, 111
      %v716 = vpop.permute.xlu0 %715
      %717 = vrot.lane.b32.xlu0 %v390, 111
      %v718 = vpop.permute.xlu0 %717
      %719 = vrot.lane.b32.xlu0 %v389, 111
      %v720 = vpop.permute.xlu0 %719
      %721 = vrot.lane.b32.xlu0 %v391, 111
      %v722 = vpop.permute.xlu0 %721
      %vm723 = vcmp.lt.s32.totalorder %v401, 111
      %v724 = vsel %vm723, %v716, %v720
      %v725 = vsel %vm723, %v718, %v722
      %v726 = vsel %vm723, %v720, %v716
      %v727 = vsel %vm723, %v722, %v718
      %s728 = scalar_lea.vmem %s6, 16
      %v729 = vld [vmem:[%s728] ss:$8 sm:$0x3]
      %v731 = vlaneseq
      %v732 = vshrl.u32 %v731, 7
      %v733 = vsub.s32 0, %v732
      %v734 = vrot.slane %v729, %v733
      %v735 = vlaneseq
      %v736 = vshrl.u32 %v735, 7
      %v737 = vsub.s32 1, %v736
      %v738 = vrot.slane %v729, %v737
      %v741 = vmul.f32 %v724, %v734
      %v742 = vmul.f32 %v726, %v738
      %v743 = vmul.f32 %v725, %v734
      %v744 = vmul.f32 %v727, %v738
      %v745 = vpack.c.bf16 %v743, %v741
      %v746 = vpack.c.bf16 %v744, %v742
      %v749 = vunpack.c.l.b16 %v745
      %v750 = vunpack.c.l.b16 %v746
      %v751 = vunpack.c.h.b16 %v745
      %v752 = vunpack.c.h.b16 %v746
      %v753 = vpack.c.b16 %v750, %v749
      %v754 = vpack.c.b16 %v752, %v751
      %757 = vst [vmem:[#allocation2 + $0x80] sm:$0xff] %v753
      %758 = vst [vmem:[#allocation2 + $0x88] sm:$0xff] %v754
      %v759 = vld [vmem:[%s5] sm:$0xf]
      %v760 = vld [vmem:[#allocation2] sm:$0xff]
      %v761 = vld [vmem:[#allocation2 + $0x8] sm:$0xff]
      %v762 = vld [vmem:[#allocation2 + $0x10] sm:$0xff]
      %v763 = vld [vmem:[#allocation2 + $0x18] sm:$0xff]
      %v764 = vld [vmem:[#allocation2 + $0x20] sm:$0xff]
      %v765 = vld [vmem:[#allocation2 + $0x28] sm:$0xff]
      %v766 = vld [vmem:[#allocation2 + $0x30] sm:$0xff]
      %v767 = vld [vmem:[#allocation2 + $0x38] sm:$0xff]
      %v768 = vld [vmem:[#allocation2 + $0x40] sm:$0xff]
      %v769 = vld [vmem:[#allocation2 + $0x48] sm:$0xff]
      %v770 = vld [vmem:[#allocation2 + $0x50] sm:$0xff]
      %v771 = vld [vmem:[#allocation2 + $0x58] sm:$0xff]
      %v772 = vld [vmem:[#allocation2 + $0x60] sm:$0xff]
      %v773 = vld [vmem:[#allocation2 + $0x68] sm:$0xff]
      %v774 = vld [vmem:[#allocation2 + $0x70] sm:$0xff]
      %v775 = vld [vmem:[#allocation2 + $0x78] sm:$0xff]
      %v776 = vld [vmem:[#allocation2 + $0x80] sm:$0xff]
      %v777 = vld [vmem:[#allocation2 + $0x88] sm:$0xff]
      %v780 = vunpack.c.l.s4 1983009808
      %v781 = vunpack.c.0.s8 %v780
      %v782 = vlaneseq
      %v783 = vshrl.u32 %v782, 7
      %v784 = vsub.s32 %v781, %v783
      %v785 = vrot.slane %v759, %v784
      %v786 = vcombine.high %v785, %v785
      %v806 = vunpack.c.l.b16 %v760
      %v807 = vunpack.c.h.b16 %v760
      %v808 = vunpack.c.l.b16 %v761
      %v809 = vunpack.c.h.b16 %v761
      %v810 = vunpack.c.l.b16 %v762
      %v811 = vunpack.c.h.b16 %v762
      %v812 = vunpack.c.l.b16 %v763
      %v813 = vunpack.c.h.b16 %v763
      %v814 = vunpack.c.l.b16 %v764
      %v815 = vunpack.c.h.b16 %v764
      %v816 = vunpack.c.l.b16 %v765
      %v817 = vunpack.c.h.b16 %v765
      %v818 = vunpack.c.l.b16 %v766
      %v819 = vunpack.c.h.b16 %v766
      %v820 = vunpack.c.l.b16 %v767
      %v821 = vunpack.c.h.b16 %v767
      %v822 = vunpack.c.l.b16 %v768
      %v823 = vunpack.c.h.b16 %v768
      %v824 = vunpack.c.l.b16 %v769
      %v825 = vunpack.c.h.b16 %v769
      %v826 = vunpack.c.l.b16 %v770
      %v827 = vunpack.c.h.b16 %v770
      %v828 = vunpack.c.l.b16 %v771
      %v829 = vunpack.c.h.b16 %v771
      %v830 = vunpack.c.l.b16 %v772
      %v831 = vunpack.c.h.b16 %v772
      %v832 = vunpack.c.l.b16 %v773
      %v833 = vunpack.c.h.b16 %v773
      %v834 = vunpack.c.l.b16 %v774
      %v835 = vunpack.c.h.b16 %v774
      %v836 = vunpack.c.l.b16 %v775
      %v837 = vunpack.c.h.b16 %v775
      %v838 = vunpack.c.l.b16 %v776
      %v839 = vunpack.c.h.b16 %v776
      %v840 = vunpack.c.l.b16 %v777
      %v841 = vunpack.c.h.b16 %v777
      %v842 = vpack.c.b16 %v808, %v806
      %v843 = vpack.c.b16 %v809, %v807
      %v844 = vpack.c.b16 %v812, %v810
      %v845 = vpack.c.b16 %v813, %v811
      %v846 = vpack.c.b16 %v816, %v814
      %v847 = vpack.c.b16 %v817, %v815
      %v848 = vpack.c.b16 %v820, %v818
      %v849 = vpack.c.b16 %v821, %v819
      %v850 = vpack.c.b16 %v824, %v822
      %v851 = vpack.c.b16 %v825, %v823
      %v852 = vpack.c.b16 %v828, %v826
      %v853 = vpack.c.b16 %v829, %v827
      %v854 = vpack.c.b16 %v832, %v830
      %v855 = vpack.c.b16 %v833, %v831
      %v856 = vpack.c.b16 %v836, %v834
      %v857 = vpack.c.b16 %v837, %v835
      %v858 = vpack.c.b16 %v840, %v838
      %v859 = vpack.c.b16 %v841, %v839
      %vm878 = vcmask 130048
      %v880 = vsel %vm878, %v786, 0
      %882 = vmatprep.subr.bf16.mxu0 %v857
      %883 = vmatpush1.bf16.msra.mxu0 %v856
      %884 = vmatprep.subr.bf16.mxu0 %v855
      %885 = vmatpush1.bf16.msra.mxu0 %v854
      %886 = vmatprep.subr.bf16.mxu0 %v853
      %887 = vmatpush1.bf16.msra.mxu0 %v852
      %888 = vmatprep.subr.bf16.mxu0 %v851
      %889 = vmatpush1.bf16.msra.mxu0 %v850
      %890 = vmatprep.subr.bf16.mxu0 %v849
      %891 = vmatpush1.bf16.msra.mxu0 %v848
      %892 = vmatprep.subr.bf16.mxu0 %v847
      %893 = vmatpush1.bf16.msra.mxu0 %v846
      %894 = vmatprep.subr.bf16.mxu0 %v845
      %895 = vmatpush1.bf16.msra.mxu0 %v844
      %896 = vmatprep.subr.bf16.mxu0 %v843
      %897 = vmatpush1.bf16.msra.mxu0 %v842
      %898 = vmatprep.subr.bf16.mxu0 0
      %899 = vmatpush2.bf16.msra.mxu0 0
      %900 = vmatprep.subr.bf16.mxu0 0
      %901 = vmatpush2.bf16.msra.mxu0 0
      %902 = vmatprep.subr.bf16.mxu0 0
      %903 = vmatpush2.bf16.msra.mxu0 0
      %904 = vmatprep.subr.bf16.mxu0 0
      %905 = vmatpush2.bf16.msra.mxu0 0
      %906 = vmatprep.subr.bf16.mxu0 0
      %907 = vmatpush2.bf16.msra.mxu0 0
      %908 = vmatprep.subr.bf16.mxu0 0
      %909 = vmatpush2.bf16.msra.mxu0 0
      %910 = vmatprep.subr.bf16.mxu0 0
      %911 = vmatpush2.bf16.msra.mxu0 0
      %912 = vmatprep.subr.bf16.mxu0 %v859
      %913 = vmatpush2.bf16.msra.mxu0 %v858
      %914 = vmatprep.mubr.bf16.mxu0 %v880
      %915 = vmatmul.mubr.bf16.gmra.mxu0 %v785
      %v916 = vpop.f32.mrf.mxu0
      %v917 = vadd.f32 0.0, %v916
      %v918 = vpop.f32.mrf.mxu0
      %v919 = vadd.f32 0.0, %v918
      %v920 = vpop.f32.mrf.mxu0
      %v921 = vpop.f32.mrf.mxu0
      %922 = vdwg.mxu0
      %v924 = vcombine.high %v280, %v280
      %926 = vst [vmem:[%s278] sm:$0xf] %v280
      %927 = vst [vmem:[%s278 + $0x8] sm:$0xf] %v924
      %v930 = vrot.slane %v917, 4
      %v931 = vrot.slane %v919, 4
      %934 = vst [vmem:[%s278] sm:$0xf0] %v930
      %935 = vst [vmem:[%s278 + $0x8] sm:$0xf0] %v931
      %p936 = scmp.lt.s32.totalorder %s18, 1
      %s937 = scalar_select %p936, %s18, 1
      %s938 = smul.addr %s937, 2
      %s939 = smul.addr %s938, 8
      %s940 = scalar_lea.vmem %s7, %s939
      // Predicated region
      $region49: #{bottleneck_block_forward.1} parent=47 // pred_check
        %p941 = pneg %p188
      $region50: #{bottleneck_block_forward.1} parent=47 // pred_check_branch
        %943 = sbr.rel (%p941) target = $region52
      $region51: #{bottleneck_block_forward.1} parent=47 // pred_region
        _
      $region52: #{bottleneck_block_forward.1} parent=47 // pred_fallthru
        _
    $region48: #{bottleneck_block_forward.1} parent=5 // pred_fallthru
      _
    %p944 = scmp.le.s32.totalorder 2, %s13
    // Predicated region
    $region53: #{bottleneck_block_forward.1} parent=5 // pred_check
      %p945 = pneg %p944
    $region54: #{bottleneck_block_forward.1} parent=5 // pred_check_branch
      %947 = sbr.rel (%p945) target = $region56
    $region55: #{bottleneck_block_forward.1} parent=5 // pred_region
      %s948 = ssub.s32 %s13, 2
      // Predicated region
      $region57: #{bottleneck_block_forward.1} parent=55 // pred_check
        %p949 = pneg %p194
      $region58: #{bottleneck_block_forward.1} parent=55 // pred_check_branch
        %951 = sbr.rel (%p949) target = $region60
      $region59: #{bottleneck_block_forward.1} parent=55 // pred_region
        %p952 = scmp.lt.s32.totalorder %s19, 1
        %s953 = scalar_select %p952, %s19, 1
        %s954 = smul.addr %s953, 2
        %s955 = smul.addr %s954, 8
        %s956 = scalar_lea.vmem %s7, %s955
      $region60: #{bottleneck_block_forward.1} parent=55 // pred_fallthru
        _
    $region56: #{bottleneck_block_forward.1} parent=5 // pred_fallthru
      _
  $region6: #{bottleneck_block_forward.1} parent=0 // loop_footer
    %s17 = sadd.s32 1, %s13
  $region7: #{bottleneck_block_forward.1} parent=0 // loop_footer_branch
    %12 = sbr.rel target = $region3
  $region8: #{bottleneck_block_forward.1} parent=0 // loop_exit
    _

</llo_original>
